<compile_context>
chip_gen: v7x
topology: tpu7x:2x2x1
jax: 0.10.0
libtpu: 0.0.40
codegen_flags: <defaults>
</compile_context>

<pallas_src>
import jax
import jax.numpy as jnp
from jax.experimental import pallas as pl
from jax.experimental.pallas import tpu as pltpu


H = 16  # padded hidden width (>= 15 and >= dy); row 15 carries the bias "ones"


def make_decoder2_kernel(F, dy, h=H):
    """Kernel body with static feature sizes baked in.  Layout: batch on lanes."""

    def kernel(xt_ref, p_ref, o_ref):
        # Static, 16-row-aligned slices of the packed parameter slab.
        w1t = p_ref[0 * h:1 * h, 0:F]    # [16, F]   (W1^T, row 15 = 0)
        w2t = p_ref[1 * h:2 * h, 0:h]    # [16, 16]  (W2^T | b2 in col 15, ones-carry)
        w3t = p_ref[2 * h:3 * h, 0:h]    # [16, 16]  (W3^T | b3 in col 15, ones-carry)
        w45t = p_ref[3 * h:4 * h, 0:h]   # [16, 16]  ((W4@W5)^T | b45 in col 15)
        b1c = p_ref[4 * h:5 * h, 0:1]    # [16, 1]   (b1 column; row 15 = 1 seeds carry)

        xt = xt_ref[...]                 # [F, tb]   batch on lanes

        # Layer 1: Linear(F, 15) + LeakyReLU(0.2).  Row 15 becomes exactly 1.0
        # (0 from the zero weight row + 1 from the bias column) and stays 1.0
        # through LeakyReLU, acting as the ones-carry for the later biases.
        a = jnp.dot(w1t, xt, preferred_element_type=jnp.float32) + b1c
        a = jnp.maximum(a, 0.2 * a)

        # Layer 2: Linear(15, 15) + LeakyReLU(0.2) (bias via ones-carry column).
        a = jnp.dot(w2t, a, preferred_element_type=jnp.float32)
        a = jnp.maximum(a, 0.2 * a)

        # Layer 3: Linear(15, 15) + LeakyReLU(0.2).
        a = jnp.dot(w3t, a, preferred_element_type=jnp.float32)
        a = jnp.maximum(a, 0.2 * a)

        # Layers 4+5 fused: Linear(15, 15) -> Linear(15, dy) == Linear(15, dy).
        a = jnp.dot(w45t, a, preferred_element_type=jnp.float32)

        o_ref[...] = a[0:dy, :].astype(o_ref.dtype)   # lane-dense (dy, tb) store

    return kernel


def pack_params(params, dim_features_y, dy):
    """Fuse layers 4+5, transpose, and pack everything into one f32 slab.

    Slab layout (shape [5*16, max(F, 16)], zero padded):
      rows [ 0:16)  W1^T           ([15, F] in top-left; row 15 zero)
      rows [16:32)  W2^T_aug       ([15,15] top-left, b2 in col 15, [15,15]=1)
      rows [32:48)  W3^T_aug       (same structure)
      rows [48:64)  (W4@W5)^T_aug  ([dy,15] top-left, b45 in col 15)
      rows [64:80)  b1 column      (col 0 rows 0:15 = b1, row 15 = 1)
    The ones-carry in hidden row 15 makes the matmuls apply biases for free.
    """
    (w1, b1), (w2, b2), (w3, b3), (w4, b4), (w5, b5) = params
    assert dy <= H, "packing assumes dy <= 16"
    F = dim_features_y
    Wp = max(F, H)

    w45 = w4 @ w5            # [15, dy]
    b45 = b4 @ w5 + b5       # [1, dy]

    slab = jnp.zeros((5 * H, Wp), jnp.float32)

    def put(s, r0, c0, arr):
        return s.at[r0:r0 + arr.shape[0], c0:c0 + arr.shape[1]].set(arr)

    def aug(w_T, b):
        """[16,16] block: transposed weight + bias in col 15 + ones-carry at [15,15]."""
        blk = jnp.zeros((H, H), jnp.float32)
        blk = blk.at[0:w_T.shape[0], 0:w_T.shape[1]].set(w_T)
        blk = blk.at[0:b.shape[1], H - 1].set(b[0])
        blk = blk.at[H - 1, H - 1].set(1.0)
        return blk

    slab = put(slab, 0 * H, 0, w1.T)                  # [15, F]
    slab = put(slab, 1 * H, 0, aug(w2.T, b2))
    slab = put(slab, 2 * H, 0, aug(w3.T, b3))

    blk45 = jnp.zeros((H, H), jnp.float32)            # no ones-carry needed (last layer)
    blk45 = blk45.at[0:dy, 0:w45.shape[0]].set(w45.T)
    blk45 = blk45.at[0:dy, H - 1].set(b45[0])
    slab = put(slab, 3 * H, 0, blk45)

    bcol = jnp.zeros((H, 1), jnp.float32)
    bcol = bcol.at[0:b1.shape[1], 0].set(b1[0])
    bcol = bcol.at[H - 1, 0].set(1.0)                 # seeds the ones-carry row
    slab = put(slab, 4 * H, 0, bcol)
    return slab


def _pick_tb(B, F, dy):
    """Batch-tile (lane) width: big, 128-aligned, VMEM-safe, >=2 grid steps if possible."""
    if B <= 1024:
        if B >= 256 and B % 256 == 0:
            return B // 2                 # two steps -> both v7x TensorCores get work
        return B                          # single full block (always a legal block shape)
    # Double-buffered x (F*tb) + out (dy*tb) tiles kept under ~16 MiB
    # (well inside v7x's 32 MiB scoped-VMEM default; huge headroom on v5e/v6e).
    cap = (16 * 1024 * 1024) // (2 * 4 * (F + dy))
    tb = max(128, (min(8192, cap) // 128) * 128)
    if B // tb < 2:                       # ensure >=2 steps for megacore sharding
        tb = max(128, ((B // 2) // 128) * 128)
    return tb


def decoder2_forward(x, slab, dy, *, tb=None):
    """x: [B, F] float32; slab: packed parameters from pack_params. Returns [B, dy]."""
    B, F = x.shape
    if tb is None:
        tb = _pick_tb(B, F, dy)
    grid = (pl.cdiv(B, tb),)

    xt = x.T  # [F, B] — batch onto lanes (plain XLA transpose outside the kernel)

    kernel = make_decoder2_kernel(F, dy)
    flops = 2 * B * H * (F + 3 * H)
    bytes_accessed = B * (F + dy) * 4 + slab.size * 4

    out_t = pl.pallas_call(
        kernel,
        out_shape=jax.ShapeDtypeStruct((dy, B), jnp.float32),
        grid=grid,
        in_specs=[
            pl.BlockSpec((F, tb), lambda i: (0, i)),         # x^T: tiled over batch lanes
            pl.BlockSpec(slab.shape, lambda i: (0, 0)),      # params: VMEM-resident,
                                                             # constant index -> no re-DMA
        ],
        out_specs=pl.BlockSpec((dy, tb), lambda i: (0, i)),  # lane-dense output
        compiler_params=pltpu.CompilerParams(
            dimension_semantics=("parallel",),               # batch axis across v7x TCs
        ),
        cost_estimate=pl.CostEstimate(
            flops=flops, transcendentals=0, bytes_accessed=bytes_accessed),
    )(xt, slab)

    return out_t.T  # back to the PyTorch [B, dy] layout


def init_params(key, dim_features_y, dy):
    """Deterministic init mimicking nn.Linear default (uniform +/- 1/sqrt(fan_in))."""
    dims = [(dim_features_y, 15), (15, 15), (15, 15), (15, 15), (15, dy)]
    params = []
    for (fan_in, fan_out) in dims:
        key, kw, kb = jax.random.split(key, 3)
        bound = 1.0 / jnp.sqrt(float(fan_in))
        w = jax.random.uniform(kw, (fan_in, fan_out), jnp.float32, -bound, bound)
        b = jax.random.uniform(kb, (1, fan_out), jnp.float32, -bound, bound)
        params.append((w, b))
    return params


def decoder2_reference(x, params):
    """Pure-JAX reference (unfused, exactly mirrors the PyTorch Sequential)."""
    h = x
    for i, (w, b) in enumerate(params):
        h = h @ w + b
        if i < 3:  # LeakyReLU only after the first three linears
            h = jnp.where(h > 0, h, 0.2 * h)
    return h


if __name__ == "__main__":
    DIM_FEATURES_Y = 32
    DY = 4
    BATCH = 8

    key = jax.random.PRNGKey(0)
    key, kx = jax.random.split(key)
    x = jax.random.normal(kx, (BATCH, DIM_FEATURES_Y), jnp.float32)
    params = init_params(key, DIM_FEATURES_Y, DY)

    slab = pack_params(params, DIM_FEATURES_Y, DY)

    out = decoder2_forward(x, slab, DY)
    out = jax.block_until_ready(out)

    ref = decoder2_reference(x, params)
    assert out.shape == (BATCH, DY), out.shape
    max_err = float(jnp.max(jnp.abs(out - ref)))
    # Tolerance accounts for the exact-but-reassociated W4@W5 host-side fusion
    # and bias application through the MXU accumulator.
    assert jnp.allclose(out, ref, atol=1e-4, rtol=1e-4), max_err

    print("KERNEL_OK")
</pallas_src>

<mosaic_0001>
module attributes {stable_mosaic.version = 11 : i64} {
  func.func @kernel(%arg0: i32, %arg1: memref<32x8xf32, #tpu.memory_space<vmem>>, %arg2: memref<80x32xf32, #tpu.memory_space<vmem>>, %arg3: memref<4x8xf32, #tpu.memory_space<vmem>>) attributes {dimension_semantics = [#tpu.dimension_semantics<parallel>], iteration_bounds = array<i64: 1>, scalar_prefetch = 0 : i64, scratch_operands = 0 : i64, tpu.core_type = #tpu.core_type<tc>, window_params = [{transform_indices = @transform_0, window_bounds = array<i64: 32, 8>}, {pipeline_mode = #tpu.pipeline_mode<synchronous>, transform_indices = @transform_1, window_bounds = array<i64: 80, 32>}, {transform_indices = @transform_2, window_bounds = array<i64: 4, 8>}]} {
    %c0 = arith.constant 0 : index
    %c0_0 = arith.constant 0 : index
    %0 = vector.load %arg2[%c0, %c0_0] : memref<80x32xf32, #tpu.memory_space<vmem>>, vector<16x32xf32>
    %c16 = arith.constant 16 : index
    %c0_1 = arith.constant 0 : index
    %1 = vector.load %arg2[%c16, %c0_1] : memref<80x32xf32, #tpu.memory_space<vmem>>, vector<16x16xf32>
    %c32 = arith.constant 32 : index
    %c0_2 = arith.constant 0 : index
    %2 = vector.load %arg2[%c32, %c0_2] : memref<80x32xf32, #tpu.memory_space<vmem>>, vector<16x16xf32>
    %c48 = arith.constant 48 : index
    %c0_3 = arith.constant 0 : index
    %3 = vector.load %arg2[%c48, %c0_3] : memref<80x32xf32, #tpu.memory_space<vmem>>, vector<16x16xf32>
    %c64 = arith.constant 64 : index
    %c0_4 = arith.constant 0 : index
    %4 = vector.load %arg2[%c64, %c0_4] : memref<80x32xf32, #tpu.memory_space<vmem>>, vector<16x1xf32>
    %c0_5 = arith.constant 0 : index
    %c0_6 = arith.constant 0 : index
    %5 = vector.load %arg1[%c0_5, %c0_6] : memref<32x8xf32, #tpu.memory_space<vmem>>, vector<32x8xf32>
    %cst = arith.constant dense<0.000000e+00> : vector<16x8xf32>
    %6 = tpu.matmul %0, %5, %cst {dimension_numbers = #tpu.dot_dimension_numbers<[1], [0], [0], [1], [0, 0, 1, 1], [], []>} : vector<16x32xf32>, vector<32x8xf32>, vector<16x8xf32> -> vector<16x8xf32>
    %7 = vector.broadcast %4 : vector<16x1xf32> to vector<16x8xf32>
    %8 = arith.addf %6, %7 : vector<16x8xf32>
    %cst_7 = arith.constant 2.000000e-01 : f32
    %9 = vector.broadcast %cst_7 : f32 to vector<16x8xf32>
    %10 = arith.mulf %9, %8 : vector<16x8xf32>
    %11 = arith.maximumf %8, %10 : vector<16x8xf32>
    %cst_8 = arith.constant dense<0.000000e+00> : vector<16x8xf32>
    %12 = tpu.matmul %1, %11, %cst_8 {dimension_numbers = #tpu.dot_dimension_numbers<[1], [0], [0], [1], [0, 0, 1, 1], [], []>} : vector<16x16xf32>, vector<16x8xf32>, vector<16x8xf32> -> vector<16x8xf32>
    %cst_9 = arith.constant 2.000000e-01 : f32
    %13 = vector.broadcast %cst_9 : f32 to vector<16x8xf32>
    %14 = arith.mulf %13, %12 : vector<16x8xf32>
    %15 = arith.maximumf %12, %14 : vector<16x8xf32>
    %cst_10 = arith.constant dense<0.000000e+00> : vector<16x8xf32>
    %16 = tpu.matmul %2, %15, %cst_10 {dimension_numbers = #tpu.dot_dimension_numbers<[1], [0], [0], [1], [0, 0, 1, 1], [], []>} : vector<16x16xf32>, vector<16x8xf32>, vector<16x8xf32> -> vector<16x8xf32>
    %cst_11 = arith.constant 2.000000e-01 : f32
    %17 = vector.broadcast %cst_11 : f32 to vector<16x8xf32>
    %18 = arith.mulf %17, %16 : vector<16x8xf32>
    %19 = arith.maximumf %16, %18 : vector<16x8xf32>
    %cst_12 = arith.constant dense<0.000000e+00> : vector<16x8xf32>
    %20 = tpu.matmul %3, %19, %cst_12 {dimension_numbers = #tpu.dot_dimension_numbers<[1], [0], [0], [1], [0, 0, 1, 1], [], []>} : vector<16x16xf32>, vector<16x8xf32>, vector<16x8xf32> -> vector<16x8xf32>
    %21 = vector.extract_strided_slice %20 {offsets = [0, 0], sizes = [4, 8], strides = [1, 1]} : vector<16x8xf32> to vector<4x8xf32>
    %c0_13 = arith.constant 0 : index
    %c0_14 = arith.constant 0 : index
    %22 = vector.load %arg3[%c0_13, %c0_14] : memref<4x8xf32, #tpu.memory_space<vmem>>, vector<4x8xf32>
    tpu.vector_store %arg3[%c0_13, %c0_14], %21 {strides = array<i32>} : memref<4x8xf32, #tpu.memory_space<vmem>>, vector<4x8xf32>,
    return
  }
  func.func @transform_0(%arg0: i32) -> (i32, i32) {
    %c0_i32 = arith.constant 0 : i32
    %c0_i32_0 = arith.constant 0 : i32
    return %c0_i32, %arg0 : i32, i32
  }
  func.func @transform_1(%arg0: i32) -> (i32, i32) {
    %c0_i32 = arith.constant 0 : i32
    %c0_i32_0 = arith.constant 0 : i32
    %c0_i32_1 = arith.constant 0 : i32
    return %c0_i32, %c0_i32_0 : i32, i32
  }
  func.func @transform_2(%arg0: i32) -> (i32, i32) {
    %c0_i32 = arith.constant 0 : i32
    %c0_i32_0 = arith.constant 0 : i32
    return %c0_i32, %arg0 : i32, i32
  }
}

</mosaic_0001>

<llo_original>
// kernel: tpu_custom_call.1
$region0: #{tpu_custom_call.1}
  #allocation0 [shape = 'u32[]', space=smem, size = 0x4, offset = 0x4, fixed_abs, tag = 'smem constant byte address 0x4 - core index']
  #allocation1 [shape = 'u32[144,128]{1,0:T(1,128)}', space=vmem, size = 0x12000, scoped, tag = 'internal scratch']
  %s0 = inlined_call_operand.vmem [shape: f32[32,8], index: 0, kind: input, shape index: {}]
  %s1 = inlined_call_operand.vmem [shape: f32[80,32], index: 1, kind: input, shape index: {}]
  %s2 = inlined_call_operand.hbm [shape: f32[4,8], index: 2, kind: output, shape index: {}]
  %s3 = sld [smem:[#allocation0]]
  $region18: #{tpu_custom_call.1} parent=0
    _
  %s5 = ssub.s32 1, %s3
  %s6 = scalar_select 0, %s5, %s3
  $region1: #{tpu_custom_call.1} parent=0
    #allocation2 [shape = 'u8[2048]{0}', space=vmem, size = 0x800, scoped, tag = 'output window, operand 0, single buffered']
    #allocation3 [shape = 's32[1]{0}', space=sflag, size = 0x4, scoped, tag = 'scoped memory for tpu_custom_call.1']
    %7 = vsyncpa [#allocation3], 0
    // Predicated region
    $region2: #{tpu_custom_call.1} parent=1 // pred_check
      _
    $region3: #{tpu_custom_call.1} parent=1 // pred_check_branch
      %9 = sbr.rel (0) target = $region5
    $region4: #{tpu_custom_call.1} parent=1 // pred_region
      _
    $region5: #{tpu_custom_call.1} parent=1 // pred_fallthru
      _
    // Predicated region
    $region6: #{tpu_custom_call.1} parent=1 // pred_check
      _
    $region7: #{tpu_custom_call.1} parent=1 // pred_check_branch
      %11 = sbr.rel (0) target = $region9
    $region8: #{tpu_custom_call.1} parent=1 // pred_region
      _
    $region9: #{tpu_custom_call.1} parent=1 // pred_fallthru
      _
    %v12 = vld [vmem:[%s1] sm:$0xff]
    %v13 = vld [vmem:[%s1 + $0x8] sm:$0xff]
    %v14 = vld [vmem:[%s1 + $0x10] sm:$0xff]
    %v15 = vld [vmem:[%s1 + $0x18] sm:$0xff]
    %v16 = vld [vmem:[%s1 + $0x20] sm:$0xff]
    %v17 = vld [vmem:[%s1 + $0x28] sm:$0xff]
    %v18 = vld [vmem:[%s1 + $0x30] sm:$0xff]
    %v19 = vld [vmem:[%s1 + $0x38] sm:$0xff]
    %v20 = vld [vmem:[%s1 + $0x40] sm:$0xff]
    %v21 = vld [vmem:[%s1 + $0x48] sm:$0xff]
    %v22 = vld [vmem:[%s0] sm:$0xff]
    %v23 = vld [vmem:[%s0 + $0x8] sm:$0xff]
    %v24 = vld [vmem:[%s0 + $0x10] sm:$0xff]
    %v25 = vld [vmem:[%s0 + $0x18] sm:$0xff]
    %27 = vset.pattern.permute.xlu0 0
    %28 = vperm.xlu0 %27, %v20
    %v29 = vpop.permute.xlu0 %28
    %32 = vset.pattern.permute.xlu0 0
    %33 = vperm.xlu0 %32, %v21
    %v34 = vpop.permute.xlu0 %33
    %vm36 = vcmask 261120
    %v38 = vsel %vm36, %v12, 0
    %v41 = vsel %vm36, %v13, 0
    %43 = vmatprep.subr.mxu0 0.0
    %44 = vmatpush1.msra.mxu0 %v22
    %45 = vmatprep.subr.mxu0 0.0
    %46 = vmatpush1.msra.mxu0 %v23
    %47 = vmatprep.subr.mxu0 0.0
    %48 = vmatpush1.msra.mxu0 %v24
    %49 = vmatprep.subr.mxu0 0.0
    %50 = vmatpush1.msra.mxu0 %v25
    %51 = vmatprep.subr.mxu0 0.0
    %52 = vmatpush1.msra.mxu0 0.0
    %53 = vmatprep.subr.mxu0 0.0
    %54 = vmatpush1.msra.mxu0 0.0
    %55 = vmatprep.subr.mxu0 0.0
    %56 = vmatpush1.msra.mxu0 0.0
    %57 = vmatprep.subr.mxu0 0.0
    %58 = vmatpush1.msra.mxu0 0.0
    %59 = vmatprep.subr.mxu0 0.0
    %60 = vmatpush1.msra.mxu0 0.0
    %61 = vmatprep.subr.mxu0 0.0
    %62 = vmatpush1.msra.mxu0 0.0
    %63 = vmatprep.subr.mxu0 0.0
    %64 = vmatpush1.msra.mxu0 0.0
    %65 = vmatprep.subr.mxu0 0.0
    %66 = vmatpush1.msra.mxu0 0.0
    %67 = vmatprep.subr.mxu0 0.0
    %68 = vmatpush1.msra.mxu0 0.0
    %69 = vmatprep.subr.mxu0 0.0
    %70 = vmatpush1.msra.mxu0 0.0
    %71 = vmatprep.subr.mxu0 0.0
    %72 = vmatpush1.msra.mxu0 0.0
    %73 = vmatprep.subr.mxu0 0.0
    %74 = vmatpush1.msra.mxu0 0.0
    %75 = vmatprep.subr.mxu0 0.0
    %76 = vmatpush1.msra.mxu0 0.0
    %77 = vmatprep.subr.mxu0 0.0
    %78 = vmatpush1.msra.mxu0 0.0
    %79 = vmatprep.subr.mxu0 0.0
    %80 = vmatpush1.msra.mxu0 0.0
    %81 = vmatprep.subr.mxu0 0.0
    %82 = vmatpush1.msra.mxu0 0.0
    %83 = vmatprep.subr.mxu0 0.0
    %84 = vmatpush1.msra.mxu0 0.0
    %85 = vmatprep.subr.mxu0 0.0
    %86 = vmatpush1.msra.mxu0 0.0
    %87 = vmatprep.subr.mxu0 0.0
    %88 = vmatpush1.msra.mxu0 0.0
    %89 = vmatprep.subr.mxu0 0.0
    %90 = vmatpush1.msra.mxu0 0.0
    %91 = vmatprep.subr.mxu0 0.0
    %92 = vmatpush1.msra.mxu0 0.0
    %93 = vmatprep.subr.mxu0 0.0
    %94 = vmatpush1.msra.mxu0 0.0
    %95 = vmatprep.subr.mxu0 0.0
    %96 = vmatpush1.msra.mxu0 0.0
    %97 = vmatprep.subr.mxu0 0.0
    %98 = vmatpush1.msra.mxu0 0.0
    %99 = vmatprep.subr.mxu0 0.0
    %100 = vmatpush1.msra.mxu0 0.0
    %101 = vmatprep.subr.mxu0 0.0
    %102 = vmatpush1.msra.mxu0 0.0
    %103 = vmatprep.subr.mxu0 0.0
    %104 = vmatpush1.msra.mxu0 0.0
    %105 = vmatprep.subr.mxu0 0.0
    %106 = vmatpush1.msra.mxu0 0.0
    %107 = vmatprep.mubr.f32.mxu0 0.0
    %108 = vmatmul.mubr.f32.gmra.mrb[0].mxu0 %v38
    %v109 = vpop.f32.mrb[0].mxu0
    %v110 = vadd.f32 %v29, %v109
    %v111 = vpop.f32.mrb[0].mxu0
    %112 = vmatprep.mubr.f32.mxu0 0.0
    %113 = vmatmul.mubr.f32.gmra.mrb[0].mxu0 %v41
    %v114 = vpop.f32.mrb[0].mxu0
    %v115 = vadd.f32 %v34, %v114
    %v116 = vpop.f32.mrb[0].mxu0
    %117 = vdwg.mxu0
    %v118 = vmul.f32 %v110, 0.2
    %v119 = vmul.f32 %v115, 0.2
    %v120 = vmax.f32 %v110, %v118
    %v121 = vmax.f32 %v115, %v119
    %vm122 = vcmask 130048
    %v124 = vsel %vm122, %v14, 0
    %v127 = vsel %vm122, %v15, 0
    %129 = vmatprep.subr.mxu0 0.0
    %130 = vmatpush1.msra.mxu0 %v120
    %131 = vmatprep.subr.mxu0 0.0
    %132 = vmatpush1.msra.mxu0 %v121
    %133 = vmatprep.subr.mxu0 0.0
    %134 = vmatpush1.msra.mxu0 0.0
    %135 = vmatprep.subr.mxu0 0.0
    %136 = vmatpush1.msra.mxu0 0.0
    %137 = vmatprep.subr.mxu0 0.0
    %138 = vmatpush1.msra.mxu0 0.0
    %139 = vmatprep.subr.mxu0 0.0
    %140 = vmatpush1.msra.mxu0 0.0
    %141 = vmatprep.subr.mxu0 0.0
    %142 = vmatpush1.msra.mxu0 0.0
    %143 = vmatprep.subr.mxu0 0.0
    %144 = vmatpush1.msra.mxu0 0.0
    %145 = vmatprep.subr.mxu0 0.0
    %146 = vmatpush1.msra.mxu0 0.0
    %147 = vmatprep.subr.mxu0 0.0
    %148 = vmatpush1.msra.mxu0 0.0
    %149 = vmatprep.subr.mxu0 0.0
    %150 = vmatpush1.msra.mxu0 0.0
    %151 = vmatprep.subr.mxu0 0.0
    %152 = vmatpush1.msra.mxu0 0.0
    %153 = vmatprep.subr.mxu0 0.0
    %154 = vmatpush1.msra.mxu0 0.0
    %155 = vmatprep.subr.mxu0 0.0
    %156 = vmatpush1.msra.mxu0 0.0
    %157 = vmatprep.subr.mxu0 0.0
    %158 = vmatpush1.msra.mxu0 0.0
    %159 = vmatprep.subr.mxu0 0.0
    %160 = vmatpush1.msra.mxu0 0.0
    %161 = vmatprep.subr.mxu0 0.0
    %162 = vmatpush1.msra.mxu0 0.0
    %163 = vmatprep.subr.mxu0 0.0
    %164 = vmatpush1.msra.mxu0 0.0
    %165 = vmatprep.subr.mxu0 0.0
    %166 = vmatpush1.msra.mxu0 0.0
    %167 = vmatprep.subr.mxu0 0.0
    %168 = vmatpush1.msra.mxu0 0.0
    %169 = vmatprep.subr.mxu0 0.0
    %170 = vmatpush1.msra.mxu0 0.0
    %171 = vmatprep.subr.mxu0 0.0
    %172 = vmatpush1.msra.mxu0 0.0
    %173 = vmatprep.subr.mxu0 0.0
    %174 = vmatpush1.msra.mxu0 0.0
    %175 = vmatprep.subr.mxu0 0.0
    %176 = vmatpush1.msra.mxu0 0.0
    %177 = vmatprep.subr.mxu0 0.0
    %178 = vmatpush1.msra.mxu0 0.0
    %179 = vmatprep.subr.mxu0 0.0
    %180 = vmatpush1.msra.mxu0 0.0
    %181 = vmatprep.subr.mxu0 0.0
    %182 = vmatpush1.msra.mxu0 0.0
    %183 = vmatprep.subr.mxu0 0.0
    %184 = vmatpush1.msra.mxu0 0.0
    %185 = vmatprep.subr.mxu0 0.0
    %186 = vmatpush1.msra.mxu0 0.0
    %187 = vmatprep.subr.mxu0 0.0
    %188 = vmatpush1.msra.mxu0 0.0
    %189 = vmatprep.subr.mxu0 0.0
    %190 = vmatpush1.msra.mxu0 0.0
    %191 = vmatprep.subr.mxu0 0.0
    %192 = vmatpush1.msra.mxu0 0.0
    %193 = vmatprep.mubr.f32.mxu0 0.0
    %194 = vmatmul.mubr.f32.gmra.mrb[0].mxu0 %v124
    %v195 = vpop.f32.mrb[0].mxu0
    %v196 = vadd.f32 0.0, %v195
    %v197 = vpop.f32.mrb[0].mxu0
    %198 = vmatprep.mubr.f32.mxu0 0.0
    %199 = vmatmul.mubr.f32.gmra.mrb[0].mxu0 %v127
    %v200 = vpop.f32.mrb[0].mxu0
    %v201 = vadd.f32 0.0, %v200
    %v202 = vpop.f32.mrb[0].mxu0
    %203 = vdwg.mxu0
    %v204 = vmul.f32 %v196, 0.2
    %v205 = vmul.f32 %v201, 0.2
    %v206 = vmax.f32 %v196, %v204
    %v207 = vmax.f32 %v201, %v205
    %v209 = vsel %vm122, %v16, 0
    %v212 = vsel %vm122, %v17, 0
    %214 = vmatprep.subr.mxu0 0.0
    %215 = vmatpush1.msra.mxu0 %v206
    %216 = vmatprep.subr.mxu0 0.0
    %217 = vmatpush1.msra.mxu0 %v207
    %218 = vmatprep.subr.mxu0 0.0
    %219 = vmatpush1.msra.mxu0 0.0
    %220 = vmatprep.subr.mxu0 0.0
    %221 = vmatpush1.msra.mxu0 0.0
    %222 = vmatprep.subr.mxu0 0.0
    %223 = vmatpush1.msra.mxu0 0.0
    %224 = vmatprep.subr.mxu0 0.0
    %225 = vmatpush1.msra.mxu0 0.0
    %226 = vmatprep.subr.mxu0 0.0
    %227 = vmatpush1.msra.mxu0 0.0
    %228 = vmatprep.subr.mxu0 0.0
    %229 = vmatpush1.msra.mxu0 0.0
    %230 = vmatprep.subr.mxu0 0.0
    %231 = vmatpush1.msra.mxu0 0.0
    %232 = vmatprep.subr.mxu0 0.0
    %233 = vmatpush1.msra.mxu0 0.0
    %234 = vmatprep.subr.mxu0 0.0
    %235 = vmatpush1.msra.mxu0 0.0
    %236 = vmatprep.subr.mxu0 0.0
    %237 = vmatpush1.msra.mxu0 0.0
    %238 = vmatprep.subr.mxu0 0.0
    %239 = vmatpush1.msra.mxu0 0.0
    %240 = vmatprep.subr.mxu0 0.0
    %241 = vmatpush1.msra.mxu0 0.0
    %242 = vmatprep.subr.mxu0 0.0
    %243 = vmatpush1.msra.mxu0 0.0
    %244 = vmatprep.subr.mxu0 0.0
    %245 = vmatpush1.msra.mxu0 0.0
    %246 = vmatprep.subr.mxu0 0.0
    %247 = vmatpush1.msra.mxu0 0.0
    %248 = vmatprep.subr.mxu0 0.0
    %249 = vmatpush1.msra.mxu0 0.0
    %250 = vmatprep.subr.mxu0 0.0
    %251 = vmatpush1.msra.mxu0 0.0
    %252 = vmatprep.subr.mxu0 0.0
    %253 = vmatpush1.msra.mxu0 0.0
    %254 = vmatprep.subr.mxu0 0.0
    %255 = vmatpush1.msra.mxu0 0.0
    %256 = vmatprep.subr.mxu0 0.0
    %257 = vmatpush1.msra.mxu0 0.0
    %258 = vmatprep.subr.mxu0 0.0
    %259 = vmatpush1.msra.mxu0 0.0
    %260 = vmatprep.subr.mxu0 0.0
    %261 = vmatpush1.msra.mxu0 0.0
    %262 = vmatprep.subr.mxu0 0.0
    %263 = vmatpush1.msra.mxu0 0.0
    %264 = vmatprep.subr.mxu0 0.0
    %265 = vmatpush1.msra.mxu0 0.0
    %266 = vmatprep.subr.mxu0 0.0
    %267 = vmatpush1.msra.mxu0 0.0
    %268 = vmatprep.subr.mxu0 0.0
    %269 = vmatpush1.msra.mxu0 0.0
    %270 = vmatprep.subr.mxu0 0.0
    %271 = vmatpush1.msra.mxu0 0.0
    %272 = vmatprep.subr.mxu0 0.0
    %273 = vmatpush1.msra.mxu0 0.0
    %274 = vmatprep.subr.mxu0 0.0
    %275 = vmatpush1.msra.mxu0 0.0
    %276 = vmatprep.subr.mxu0 0.0
    %277 = vmatpush1.msra.mxu0 0.0
    %278 = vmatprep.mubr.f32.mxu0 0.0
    %279 = vmatmul.mubr.f32.gmra.mrb[0].mxu0 %v209
    %v280 = vpop.f32.mrb[0].mxu0
    %v281 = vadd.f32 0.0, %v280
    %v282 = vpop.f32.mrb[0].mxu0
    %283 = vmatprep.mubr.f32.mxu0 0.0
    %284 = vmatmul.mubr.f32.gmra.mrb[0].mxu0 %v212
    %v285 = vpop.f32.mrb[0].mxu0
    %v286 = vadd.f32 0.0, %v285
    %v287 = vpop.f32.mrb[0].mxu0
    %288 = vdwg.mxu0
    %v289 = vmul.f32 %v281, 0.2
    %v290 = vmul.f32 %v286, 0.2
    %v291 = vmax.f32 %v281, %v289
    %v292 = vmax.f32 %v286, %v290
    %v294 = vsel %vm122, %v18, 0
    %v297 = vsel %vm122, %v19, 0
    %299 = vmatprep.subr.mxu0 0.0
    %300 = vmatpush1.msra.mxu0 %v291
    %301 = vmatprep.subr.mxu0 0.0
    %302 = vmatpush1.msra.mxu0 %v292
    %303 = vmatprep.subr.mxu0 0.0
    %304 = vmatpush1.msra.mxu0 0.0
    %305 = vmatprep.subr.mxu0 0.0
    %306 = vmatpush1.msra.mxu0 0.0
    %307 = vmatprep.subr.mxu0 0.0
    %308 = vmatpush1.msra.mxu0 0.0
    %309 = vmatprep.subr.mxu0 0.0
    %310 = vmatpush1.msra.mxu0 0.0
    %311 = vmatprep.subr.mxu0 0.0
    %312 = vmatpush1.msra.mxu0 0.0
    %313 = vmatprep.subr.mxu0 0.0
    %314 = vmatpush1.msra.mxu0 0.0
    %315 = vmatprep.subr.mxu0 0.0
    %316 = vmatpush1.msra.mxu0 0.0
    %317 = vmatprep.subr.mxu0 0.0
    %318 = vmatpush1.msra.mxu0 0.0
    %319 = vmatprep.subr.mxu0 0.0
    %320 = vmatpush1.msra.mxu0 0.0
    %321 = vmatprep.subr.mxu0 0.0
    %322 = vmatpush1.msra.mxu0 0.0
    %323 = vmatprep.subr.mxu0 0.0
    %324 = vmatpush1.msra.mxu0 0.0
    %325 = vmatprep.subr.mxu0 0.0
    %326 = vmatpush1.msra.mxu0 0.0
    %327 = vmatprep.subr.mxu0 0.0
    %328 = vmatpush1.msra.mxu0 0.0
    %329 = vmatprep.subr.mxu0 0.0
    %330 = vmatpush1.msra.mxu0 0.0
    %331 = vmatprep.subr.mxu0 0.0
    %332 = vmatpush1.msra.mxu0 0.0
    %333 = vmatprep.subr.mxu0 0.0
    %334 = vmatpush1.msra.mxu0 0.0
    %335 = vmatprep.subr.mxu0 0.0
    %336 = vmatpush1.msra.mxu0 0.0
    %337 = vmatprep.subr.mxu0 0.0
    %338 = vmatpush1.msra.mxu0 0.0
    %339 = vmatprep.subr.mxu0 0.0
    %340 = vmatpush1.msra.mxu0 0.0
    %341 = vmatprep.subr.mxu0 0.0
    %342 = vmatpush1.msra.mxu0 0.0
    %343 = vmatprep.subr.mxu0 0.0
    %344 = vmatpush1.msra.mxu0 0.0
    %345 = vmatprep.subr.mxu0 0.0
    %346 = vmatpush1.msra.mxu0 0.0
    %347 = vmatprep.subr.mxu0 0.0
    %348 = vmatpush1.msra.mxu0 0.0
    %349 = vmatprep.subr.mxu0 0.0
    %350 = vmatpush1.msra.mxu0 0.0
    %351 = vmatprep.subr.mxu0 0.0
    %352 = vmatpush1.msra.mxu0 0.0
    %353 = vmatprep.subr.mxu0 0.0
    %354 = vmatpush1.msra.mxu0 0.0
    %355 = vmatprep.subr.mxu0 0.0
    %356 = vmatpush1.msra.mxu0 0.0
    %357 = vmatprep.subr.mxu0 0.0
    %358 = vmatpush1.msra.mxu0 0.0
    %359 = vmatprep.subr.mxu0 0.0
    %360 = vmatpush1.msra.mxu0 0.0
    %361 = vmatprep.subr.mxu0 0.0
    %362 = vmatpush1.msra.mxu0 0.0
    %363 = vmatprep.mubr.f32.mxu0 0.0
    %364 = vmatmul.mubr.f32.gmra.mrb[0].mxu0 %v294
    %v365 = vpop.f32.mrb[0].mxu0
    %v366 = vadd.f32 0.0, %v365
    %v367 = vpop.f32.mrb[0].mxu0
    %368 = vmatprep.mubr.f32.mxu0 0.0
    %369 = vmatmul.mubr.f32.gmra.mrb[0].mxu0 %v297
    %v370 = vpop.f32.mrb[0].mxu0
    %v371 = vpop.f32.mrb[0].mxu0
    %372 = vdwg.mxu0
    %vm373 = vcmask 60416
    %374 = vst.msk [vmem:[#allocation2] sm:$0xf] %vm373, %v366
    // Predicated region
    $region10: #{tpu_custom_call.1} parent=1 // pred_check
      _
    $region11: #{tpu_custom_call.1} parent=1 // pred_check_branch
      %376 = sbr.rel (0) target = $region13
    $region12: #{tpu_custom_call.1} parent=1 // pred_region
      %s378 = ssub.s32 64, 64
      %379 = vsyncadd [#allocation3], %s378
      %s381 = sshll.u32 [#allocation2], 4
      %s382 = int_to_ptr.vmem [resolvable:$true] %s381
      %384 = dma.vmem_to_hbm [thread:$0]  %s382, 64, %s2, [#allocation3]
    $region13: #{tpu_custom_call.1} parent=1 // pred_fallthru
      _
    // Predicated region
    $region14: #{tpu_custom_call.1} parent=1 // pred_check
      _
    $region15: #{tpu_custom_call.1} parent=1 // pred_check_branch
      %386 = sbr.rel (0) target = $region17
    $region16: #{tpu_custom_call.1} parent=1 // pred_region
      %387 = dma.done [#allocation3], 64
    $region17: #{tpu_custom_call.1} parent=1 // pred_fallthru
      _
    %388 = vsyncpa [#allocation3], 1

</llo_original>
